<compile_context>
chip_gen: v7x
topology: tpu7x:2x2x1
jax: 0.10.0
libtpu: 0.0.40
codegen_flags: <defaults>
</compile_context>

<pallas_src>
import functools

import jax
import jax.numpy as jnp
from jax.experimental import pallas as pl
from jax.experimental.pallas import tpu as pltpu


def _round_up(n, m):
    return (n + m - 1) // m * m


def qnet_kernel(x_ref, w_ref, b_ref, o_ref, *, dims, out_pad):
    """x_ref: [TB, in_dim]   natural-layout input block
       w_ref: [L, P, P]      padded PyTorch-layout weights [fan_out, fan_in]
       b_ref: [L, P, 1]      padded biases (always f32)
       o_ref: [TB, out_dim]  natural-layout output block
    Internally activations are transposed ([feat, TB], batch on the 128-lane
    axis) so matmul feeds and the f32 bias/ReLU epilogue are lane-dense."""
    cdt = w_ref.dtype                       # MXU compute dtype (bf16 or f32)
    n_layers = len(dims) - 1
    out_dim = dims[-1]

    # Layer 1: contract the feature axis of the untransposed block
    # ('oi,bi->ob', the same dot_general pattern as flash-attn q.k^T) -> [d1, TB].
    xb = x_ref[...].astype(cdt)
    w1 = w_ref[0, :dims[1], :dims[0]]
    h = jax.lax.dot_general(w1, xb, (((1,), (1,)), ((), ())),
                            preferred_element_type=jnp.float32)
    h = jnp.maximum(h + b_ref[0, :dims[1]], 0.0).astype(cdt)

    # Hidden layers: true-width weights, f32 accumulate, f32 bias/ReLU, cast.
    for i in range(1, n_layers - 1):
        w = w_ref[i, :dims[i + 1], :dims[i]]
        h = jnp.dot(w, h, preferred_element_type=jnp.float32)
        h = jnp.maximum(h + b_ref[i, :dims[i + 1]], 0.0).astype(cdt)

    # Final Linear (no ReLU).  Rows padded to out_pad (multiple of 8) so the
    # in-kernel transpose back to natural layout is sublane-aligned.
    w_last = w_ref[n_layers - 1, :out_pad, :dims[n_layers - 1]]
    out = jnp.dot(w_last, h, preferred_element_type=jnp.float32)
    out = out + b_ref[n_layers - 1, :out_pad]           # [out_pad, TB] f32
    o_ref[...] = out.T[:, :out_dim].astype(o_ref.dtype)  # natural [TB, out_dim]


def qnet_forward(x, w_packed, b_packed, layer_dims, *, block_b=4096,
                 min_blocks=2):
    """x: [B, in_dim] (any float dtype).  w_packed: [L, P, P], b_packed:
    [L, P, 1] from pack_params.  Returns [B, out_dim] float32."""
    B, in_dim = x.shape
    L, P, _ = w_packed.shape
    assert in_dim == layer_dims[0] and L == len(layer_dims) - 1
    out_dim = layer_dims[-1]
    out_pad = _round_up(out_dim, 8)
    assert out_pad <= P

    # Batch tile: multiple of 128 (batch is the lane axis inside the kernel).
    TB = min(_round_up(block_b, 128), _round_up(B, 128))
    # v7x megacore: keep >= min_blocks grid steps so both TensorCores get work
    # (no-op on v5e/v6e single-TC chips and for tiny batches).
    if B > 128 and min_blocks > 1:
        TB = min(TB, _round_up(pl.cdiv(B, min_blocks), 128))
    Bp = _round_up(B, TB)
    num_blocks = Bp // TB

    # Only pad batch rows if needed (no transpose, no lane padding in HBM).
    x_in = x if Bp == B else jnp.pad(x, ((0, Bp - B), (0, 0)))

    kernel = functools.partial(qnet_kernel, dims=tuple(layer_dims),
                               out_pad=out_pad)

    out = pl.pallas_call(
        kernel,
        out_shape=jax.ShapeDtypeStruct((Bp, out_dim), jnp.float32),
        grid=(num_blocks,),
        in_specs=[
            # x tile: pipelined (double-buffered) over the batch grid.
            pl.BlockSpec((TB, in_dim), lambda i: (i, 0)),
            # Packed weights / biases: constant index_map -> DMA'd once and
            # resident in VMEM across all grid steps.
            pl.BlockSpec((L, P, P), lambda i: (0, 0, 0)),
            pl.BlockSpec((L, P, 1), lambda i: (0, 0, 0)),
        ],
        out_specs=pl.BlockSpec((TB, out_dim), lambda i: (i, 0)),
        compiler_params=pltpu.CompilerParams(
            dimension_semantics=("parallel",),
            vmem_limit_bytes=32 * 1024 * 1024),
    )(x_in, w_packed, b_packed)

    return out if Bp == B else out[:B]


def init_params(key, in_dim, out_dim, hidden_dims=(32, 64, 32)):
    """PyTorch nn.Linear-style init. W: [fan_out, fan_in], b: [fan_out]."""
    dims = [in_dim] + list(hidden_dims) + [out_dim]
    params = []
    for i in range(len(dims) - 1):
        key, kw, kb = jax.random.split(key, 3)
        fan_in, fan_out = dims[i], dims[i + 1]
        bound = float(1.0 / (fan_in ** 0.5))
        w = jax.random.uniform(kw, (fan_out, fan_in), jnp.float32, -bound, bound)
        b = jax.random.uniform(kb, (fan_out,), jnp.float32, -bound, bound)
        params.append((w, b))
    return params


def layer_dims_of(params):
    return [params[0][0].shape[1]] + [w.shape[0] for w, _ in params]


def pack_params(params, pad=128, dtype=jnp.bfloat16):
    """Zero-pad every layer to [pad, pad] and stack into single packed buffers.

    Weights stay in PyTorch layout [fan_out, fan_in]; the kernel slices the
    true widths back out.  Biases are kept in f32 regardless of weight dtype.
    bf16 is the default MXU fast path (f32 accumulation inside the kernel)."""
    L = len(params)
    w_packed = jnp.zeros((L, pad, pad), dtype)
    b_packed = jnp.zeros((L, pad, 1), jnp.float32)
    for i, (w, b) in enumerate(params):
        fo, fi = w.shape
        assert fo <= pad and fi <= pad, (
            f"layer {i}: dims {(fo, fi)} exceed pad={pad}")
        w_packed = w_packed.at[i, :fo, :fi].set(w.astype(dtype))
        b_packed = b_packed.at[i, :fo, 0].set(b.astype(jnp.float32))
    return w_packed, b_packed


def qnet_ref(x, params):
    """Pure-JAX reference matching the PyTorch module (x @ W.T + b, ReLU)."""
    h = x
    n = len(params)
    for i, (w, b) in enumerate(params):
        h = h @ w.T + b
        if i != n - 1:
            h = jnp.maximum(h, 0.0)
    return h


if __name__ == "__main__":
    key = jax.random.PRNGKey(0)
    k_params, k_x, k_x2 = jax.random.split(key, 3)

    in_dim, out_dim = 8, 4
    params = init_params(k_params, in_dim, out_dim)
    dims = layer_dims_of(params)                       # [8, 32, 64, 32, 4]

    # ---- small batch, f32 weights: exactness of the fused structure ---------
    B = 8
    x = jax.random.normal(k_x, (B, in_dim), jnp.float32)
    w_f32, b_f32 = pack_params(params, dtype=jnp.float32)
    out = jax.block_until_ready(qnet_forward(x, w_f32, b_f32, dims))
    ref = qnet_ref(x, params)
    assert out.shape == (B, out_dim)
    assert jnp.allclose(out, ref, atol=1e-4, rtol=1e-4)

    # ---- multi-block batch (3 tiles of 128 rows), f32 path ------------------
    B2 = 300
    x2 = jax.random.normal(k_x2, (B2, in_dim), jnp.float32)
    out2 = jax.block_until_ready(
        qnet_forward(x2, w_f32, b_f32, dims, block_b=128))
    ref2 = qnet_ref(x2, params)
    assert out2.shape == (B2, out_dim)
    assert jnp.allclose(out2, ref2, atol=1e-4, rtol=1e-4)

    # ---- default bf16 MXU path (f32 accumulate + f32 epilogue) --------------
    w_bf16, b_bf16 = pack_params(params)               # bf16 by default now
    out_bf16 = jax.block_until_ready(
        qnet_forward(x2, w_bf16, b_bf16, dims, block_b=128))
    assert out_bf16.shape == (B2, out_dim)
    assert jnp.allclose(out_bf16, ref2, atol=5e-2, rtol=5e-2)

    print("KERNEL_OK")
</pallas_src>

<mosaic_0001>
module attributes {stable_mosaic.version = 11 : i64} {
  func.func @qnet_kernel(%arg0: i32, %arg1: memref<128x8xf32, #tpu.memory_space<vmem>>, %arg2: memref<4x128x128xf32, #tpu.memory_space<vmem>>, %arg3: memref<4x128x1xf32, #tpu.memory_space<vmem>>, %arg4: memref<128x4xf32, #tpu.memory_space<vmem>>) attributes {dimension_semantics = [#tpu.dimension_semantics<parallel>], iteration_bounds = array<i64: 1>, scalar_prefetch = 0 : i64, scratch_operands = 0 : i64, tpu.core_type = #tpu.core_type<tc>, window_params = [{transform_indices = @transform_0, window_bounds = array<i64: 128, 8>}, {pipeline_mode = #tpu.pipeline_mode<synchronous>, transform_indices = @transform_1, window_bounds = array<i64: 4, 128, 128>}, {pipeline_mode = #tpu.pipeline_mode<synchronous>, transform_indices = @transform_2, window_bounds = array<i64: 4, 128, 1>}, {transform_indices = @transform_3, window_bounds = array<i64: 128, 4>}]} {
    %c0 = arith.constant 0 : index
    %c0_0 = arith.constant 0 : index
    %0 = vector.load %arg1[%c0, %c0_0] : memref<128x8xf32, #tpu.memory_space<vmem>>, vector<128x8xf32>
    %c0_1 = arith.constant 0 : index
    %c0_2 = arith.constant 0 : index
    %c0_3 = arith.constant 0 : index
    %1 = vector.load %arg2[%c0_1, %c0_2, %c0_3] : memref<4x128x128xf32, #tpu.memory_space<vmem>>, vector<1x32x8xf32>
    %2 = vector.shape_cast %1 : vector<1x32x8xf32> to vector<32x8xf32>
    %cst = arith.constant dense<0.000000e+00> : vector<32x128xf32>
    %3 = tpu.matmul %2, %0, %cst {dimension_numbers = #tpu.dot_dimension_numbers<[1], [1], [0], [0], [0, 0, 1, 0], [], []>} : vector<32x8xf32>, vector<128x8xf32>, vector<32x128xf32> -> vector<32x128xf32>
    %c0_4 = arith.constant 0 : index
    %c0_5 = arith.constant 0 : index
    %c0_6 = arith.constant 0 : index
    %4 = vector.load %arg3[%c0_4, %c0_5, %c0_6] : memref<4x128x1xf32, #tpu.memory_space<vmem>>, vector<1x32x1xf32>
    %5 = vector.shape_cast %4 : vector<1x32x1xf32> to vector<32x1xf32>
    %6 = vector.broadcast %5 : vector<32x1xf32> to vector<32x128xf32>
    %7 = arith.addf %3, %6 : vector<32x128xf32>
    %cst_7 = arith.constant 0.000000e+00 : f32
    %8 = vector.broadcast %cst_7 : f32 to vector<32x128xf32>
    %9 = arith.maximumf %7, %8 : vector<32x128xf32>
    %c1 = arith.constant 1 : index
    %c0_8 = arith.constant 0 : index
    %c0_9 = arith.constant 0 : index
    %10 = vector.load %arg2[%c1, %c0_8, %c0_9] : memref<4x128x128xf32, #tpu.memory_space<vmem>>, vector<1x64x32xf32>
    %11 = vector.shape_cast %10 : vector<1x64x32xf32> to vector<64x32xf32>
    %cst_10 = arith.constant dense<0.000000e+00> : vector<64x128xf32>
    %12 = tpu.matmul %11, %9, %cst_10 {dimension_numbers = #tpu.dot_dimension_numbers<[1], [0], [0], [1], [0, 0, 1, 1], [], []>} : vector<64x32xf32>, vector<32x128xf32>, vector<64x128xf32> -> vector<64x128xf32>
    %c1_11 = arith.constant 1 : index
    %c0_12 = arith.constant 0 : index
    %c0_13 = arith.constant 0 : index
    %13 = vector.load %arg3[%c1_11, %c0_12, %c0_13] : memref<4x128x1xf32, #tpu.memory_space<vmem>>, vector<1x64x1xf32>
    %14 = vector.shape_cast %13 : vector<1x64x1xf32> to vector<64x1xf32>
    %15 = vector.broadcast %14 : vector<64x1xf32> to vector<64x128xf32>
    %16 = arith.addf %12, %15 : vector<64x128xf32>
    %cst_14 = arith.constant 0.000000e+00 : f32
    %17 = vector.broadcast %cst_14 : f32 to vector<64x128xf32>
    %18 = arith.maximumf %16, %17 : vector<64x128xf32>
    %c2 = arith.constant 2 : index
    %c0_15 = arith.constant 0 : index
    %c0_16 = arith.constant 0 : index
    %19 = vector.load %arg2[%c2, %c0_15, %c0_16] : memref<4x128x128xf32, #tpu.memory_space<vmem>>, vector<1x32x64xf32>
    %20 = vector.shape_cast %19 : vector<1x32x64xf32> to vector<32x64xf32>
    %cst_17 = arith.constant dense<0.000000e+00> : vector<32x128xf32>
    %21 = tpu.matmul %20, %18, %cst_17 {dimension_numbers = #tpu.dot_dimension_numbers<[1], [0], [0], [1], [0, 0, 1, 1], [], []>} : vector<32x64xf32>, vector<64x128xf32>, vector<32x128xf32> -> vector<32x128xf32>
    %c2_18 = arith.constant 2 : index
    %c0_19 = arith.constant 0 : index
    %c0_20 = arith.constant 0 : index
    %22 = vector.load %arg3[%c2_18, %c0_19, %c0_20] : memref<4x128x1xf32, #tpu.memory_space<vmem>>, vector<1x32x1xf32>
    %23 = vector.shape_cast %22 : vector<1x32x1xf32> to vector<32x1xf32>
    %24 = vector.broadcast %23 : vector<32x1xf32> to vector<32x128xf32>
    %25 = arith.addf %21, %24 : vector<32x128xf32>
    %cst_21 = arith.constant 0.000000e+00 : f32
    %26 = vector.broadcast %cst_21 : f32 to vector<32x128xf32>
    %27 = arith.maximumf %25, %26 : vector<32x128xf32>
    %c3 = arith.constant 3 : index
    %c0_22 = arith.constant 0 : index
    %c0_23 = arith.constant 0 : index
    %28 = vector.load %arg2[%c3, %c0_22, %c0_23] : memref<4x128x128xf32, #tpu.memory_space<vmem>>, vector<1x8x32xf32>
    %29 = vector.shape_cast %28 : vector<1x8x32xf32> to vector<8x32xf32>
    %cst_24 = arith.constant dense<0.000000e+00> : vector<8x128xf32>
    %30 = tpu.matmul %29, %27, %cst_24 {dimension_numbers = #tpu.dot_dimension_numbers<[1], [0], [0], [1], [0, 0, 1, 1], [], []>} : vector<8x32xf32>, vector<32x128xf32>, vector<8x128xf32> -> vector<8x128xf32>
    %c3_25 = arith.constant 3 : index
    %c0_26 = arith.constant 0 : index
    %c0_27 = arith.constant 0 : index
    %31 = vector.load %arg3[%c3_25, %c0_26, %c0_27] : memref<4x128x1xf32, #tpu.memory_space<vmem>>, vector<1x8x1xf32>
    %32 = vector.shape_cast %31 : vector<1x8x1xf32> to vector<8x1xf32>
    %33 = vector.broadcast %32 : vector<8x1xf32> to vector<8x128xf32>
    %34 = arith.addf %30, %33 : vector<8x128xf32>
    %35 = tpu.transpose %34, [1, 0] : vector<8x128xf32> -> vector<128x8xf32>
    %36 = vector.extract_strided_slice %35 {offsets = [0, 0], sizes = [128, 4], strides = [1, 1]} : vector<128x8xf32> to vector<128x4xf32>
    %c0_28 = arith.constant 0 : index
    %c0_29 = arith.constant 0 : index
    %37 = vector.load %arg4[%c0_28, %c0_29] : memref<128x4xf32, #tpu.memory_space<vmem>>, vector<128x4xf32>
    tpu.vector_store %arg4[%c0_28, %c0_29], %36 {strides = array<i32>} : memref<128x4xf32, #tpu.memory_space<vmem>>, vector<128x4xf32>,
    return
  }
  func.func @transform_0(%arg0: i32) -> (i32, i32) {
    %c0_i32 = arith.constant 0 : i32
    %c0_i32_0 = arith.constant 0 : i32
    return %arg0, %c0_i32 : i32, i32
  }
  func.func @transform_1(%arg0: i32) -> (i32, i32, i32) {
    %c0_i32 = arith.constant 0 : i32
    %c0_i32_0 = arith.constant 0 : i32
    %c0_i32_1 = arith.constant 0 : i32
    %c0_i32_2 = arith.constant 0 : i32
    return %c0_i32, %c0_i32_0, %c0_i32_1 : i32, i32, i32
  }
  func.func @transform_2(%arg0: i32) -> (i32, i32, i32) {
    %c0_i32 = arith.constant 0 : i32
    %c0_i32_0 = arith.constant 0 : i32
    %c0_i32_1 = arith.constant 0 : i32
    %c0_i32_2 = arith.constant 0 : i32
    return %c0_i32, %c0_i32_0, %c0_i32_1 : i32, i32, i32
  }
  func.func @transform_3(%arg0: i32) -> (i32, i32) {
    %c0_i32 = arith.constant 0 : i32
    %c0_i32_0 = arith.constant 0 : i32
    return %arg0, %c0_i32 : i32, i32
  }
}

</mosaic_0001>

<llo_original>
// kernel: tpu_custom_call.1
$region0: #{tpu_custom_call.1}
  #allocation0 [shape = 'u32[]', space=smem, size = 0x4, offset = 0x4, fixed_abs, tag = 'smem constant byte address 0x4 - core index']
  #allocation1 [shape = 'u32[144,128]{1,0:T(1,128)}', space=vmem, size = 0x12000, scoped, tag = 'internal scratch']
  %s0 = inlined_call_operand.vmem [shape: f32[128,8], index: 0, kind: input, shape index: {}]
  %s1 = inlined_call_operand.vmem [shape: f32[4,128,128], index: 1, kind: input, shape index: {}]
  %s2 = inlined_call_operand.vmem [shape: f32[4,128,1], index: 2, kind: input, shape index: {}]
  %s3 = inlined_call_operand.vmem [shape: f32[128,4], index: 3, kind: output, shape index: {}]
  %s4 = sld [smem:[#allocation0]]
  $region22: #{tpu_custom_call.1} parent=0
    _
  %s6 = ssub.s32 1, %s4
  %s7 = scalar_select 0, %s6, %s4
  // Predicated region
  $region2: #{tpu_custom_call.1} parent=0 // pred_check
    _
  $region3: #{tpu_custom_call.1} parent=0 // pred_check_branch
    %9 = sbr.rel (0) target = $region5
  $region4: #{tpu_custom_call.1} parent=0 // pred_region
    _
  $region5: #{tpu_custom_call.1} parent=0 // pred_fallthru
    _
  // Predicated region
  $region6: #{tpu_custom_call.1} parent=0 // pred_check
    _
  $region7: #{tpu_custom_call.1} parent=0 // pred_check_branch
    %11 = sbr.rel (0) target = $region9
  $region8: #{tpu_custom_call.1} parent=0 // pred_region
    _
  $region9: #{tpu_custom_call.1} parent=0 // pred_fallthru
    _
  // Predicated region
  $region10: #{tpu_custom_call.1} parent=0 // pred_check
    _
  $region11: #{tpu_custom_call.1} parent=0 // pred_check_branch
    %13 = sbr.rel (0) target = $region13
  $region12: #{tpu_custom_call.1} parent=0 // pred_region
    _
  $region13: #{tpu_custom_call.1} parent=0 // pred_fallthru
    _
  %v14 = vld [vmem:[%s0] sm:$0xff]
  %v15 = vld [vmem:[%s0 + $0x8] sm:$0xff]
  %v16 = vld [vmem:[%s0 + $0x10] sm:$0xff]
  %v17 = vld [vmem:[%s0 + $0x18] sm:$0xff]
  %v18 = vld [vmem:[%s0 + $0x20] sm:$0xff]
  %v19 = vld [vmem:[%s0 + $0x28] sm:$0xff]
  %v20 = vld [vmem:[%s0 + $0x30] sm:$0xff]
  %v21 = vld [vmem:[%s0 + $0x38] sm:$0xff]
  %v22 = vld [vmem:[%s0 + $0x40] sm:$0xff]
  %v23 = vld [vmem:[%s0 + $0x48] sm:$0xff]
  %v24 = vld [vmem:[%s0 + $0x50] sm:$0xff]
  %v25 = vld [vmem:[%s0 + $0x58] sm:$0xff]
  %v26 = vld [vmem:[%s0 + $0x60] sm:$0xff]
  %v27 = vld [vmem:[%s0 + $0x68] sm:$0xff]
  %v28 = vld [vmem:[%s0 + $0x70] sm:$0xff]
  %v29 = vld [vmem:[%s0 + $0x78] sm:$0xff]
  %v30 = vld [vmem:[%s1] sm:$0xff]
  %v31 = vld [vmem:[%s1 + $0x8] sm:$0xff]
  %v32 = vld [vmem:[%s1 + $0x10] sm:$0xff]
  %v33 = vld [vmem:[%s1 + $0x18] sm:$0xff]
  %v34 = vld [vmem:[%s2] sm:$0xff]
  %v35 = vld [vmem:[%s2 + $0x8] sm:$0xff]
  %v36 = vld [vmem:[%s2 + $0x10] sm:$0xff]
  %v37 = vld [vmem:[%s2 + $0x18] sm:$0xff]
  %39 = vset.pattern.permute.xlu0 0
  %40 = vperm.xlu0 %39, %v34
  %v41 = vpop.permute.xlu0 %40
  %44 = vset.pattern.permute.xlu0 0
  %45 = vperm.xlu0 %44, %v35
  %v46 = vpop.permute.xlu0 %45
  %49 = vset.pattern.permute.xlu0 0
  %50 = vperm.xlu0 %49, %v36
  %v51 = vpop.permute.xlu0 %50
  %54 = vset.pattern.permute.xlu0 0
  %55 = vperm.xlu0 %54, %v37
  %v56 = vpop.permute.xlu0 %55
  %vm58 = vcmask 64512
  %v60 = vsel %vm58, %v30, 0
  %v63 = vsel %vm58, %v31, 0
  %v66 = vsel %vm58, %v32, 0
  %v69 = vsel %vm58, %v33, 0
  %v72 = vsel %vm58, %v14, 0
  %v75 = vsel %vm58, %v15, 0
  %v78 = vsel %vm58, %v16, 0
  %v81 = vsel %vm58, %v17, 0
  %v84 = vsel %vm58, %v18, 0
  %v87 = vsel %vm58, %v19, 0
  %v90 = vsel %vm58, %v20, 0
  %v93 = vsel %vm58, %v21, 0
  %v96 = vsel %vm58, %v22, 0
  %v99 = vsel %vm58, %v23, 0
  %v102 = vsel %vm58, %v24, 0
  %v105 = vsel %vm58, %v25, 0
  %v108 = vsel %vm58, %v26, 0
  %v111 = vsel %vm58, %v27, 0
  %v114 = vsel %vm58, %v28, 0
  %v117 = vsel %vm58, %v29, 0
  %119 = vmatprep.subr.mxu0 0.0
  %120 = vmatpush1.xpose.msra.mxu0 %v72
  %121 = vmatprep.subr.mxu0 0.0
  %122 = vmatpush1.xpose.msra.mxu0 %v75
  %123 = vmatprep.subr.mxu0 0.0
  %124 = vmatpush1.xpose.msra.mxu0 %v78
  %125 = vmatprep.subr.mxu0 0.0
  %126 = vmatpush1.xpose.msra.mxu0 %v81
  %127 = vmatprep.subr.mxu0 0.0
  %128 = vmatpush1.xpose.msra.mxu0 %v84
  %129 = vmatprep.subr.mxu0 0.0
  %130 = vmatpush1.xpose.msra.mxu0 %v87
  %131 = vmatprep.subr.mxu0 0.0
  %132 = vmatpush1.xpose.msra.mxu0 %v90
  %133 = vmatprep.subr.mxu0 0.0
  %134 = vmatpush1.xpose.msra.mxu0 %v93
  %135 = vmatprep.subr.mxu0 0.0
  %136 = vmatpush1.xpose.msra.mxu0 %v96
  %137 = vmatprep.subr.mxu0 0.0
  %138 = vmatpush1.xpose.msra.mxu0 %v99
  %139 = vmatprep.subr.mxu0 0.0
  %140 = vmatpush1.xpose.msra.mxu0 %v102
  %141 = vmatprep.subr.mxu0 0.0
  %142 = vmatpush1.xpose.msra.mxu0 %v105
  %143 = vmatprep.subr.mxu0 0.0
  %144 = vmatpush1.xpose.msra.mxu0 %v108
  %145 = vmatprep.subr.mxu0 0.0
  %146 = vmatpush1.xpose.msra.mxu0 %v111
  %147 = vmatprep.subr.mxu0 0.0
  %148 = vmatpush1.xpose.msra.mxu0 %v114
  %149 = vmatprep.subr.mxu0 0.0
  %150 = vmatpush1.xpose.msra.mxu0 %v117
  %151 = vmatprep.subr.mxu0 0.0
  %152 = vmatpush1.xpose.msra.mxu0 0.0
  %153 = vmatprep.subr.mxu0 0.0
  %154 = vmatpush1.xpose.msra.mxu0 0.0
  %155 = vmatprep.subr.mxu0 0.0
  %156 = vmatpush1.xpose.msra.mxu0 0.0
  %157 = vmatprep.subr.mxu0 0.0
  %158 = vmatpush1.xpose.msra.mxu0 0.0
  %159 = vmatprep.subr.mxu0 0.0
  %160 = vmatpush1.xpose.msra.mxu0 0.0
  %161 = vmatprep.subr.mxu0 0.0
  %162 = vmatpush1.xpose.msra.mxu0 0.0
  %163 = vmatprep.subr.mxu0 0.0
  %164 = vmatpush1.xpose.msra.mxu0 0.0
  %165 = vmatprep.subr.mxu0 0.0
  %166 = vmatpush1.xpose.msra.mxu0 0.0
  %167 = vmatprep.subr.mxu0 0.0
  %168 = vmatpush1.xpose.msra.mxu0 0.0
  %169 = vmatprep.subr.mxu0 0.0
  %170 = vmatpush1.xpose.msra.mxu0 0.0
  %171 = vmatprep.subr.mxu0 0.0
  %172 = vmatpush1.xpose.msra.mxu0 0.0
  %173 = vmatprep.subr.mxu0 0.0
  %174 = vmatpush1.xpose.msra.mxu0 0.0
  %175 = vmatprep.subr.mxu0 0.0
  %176 = vmatpush1.xpose.msra.mxu0 0.0
  %177 = vmatprep.subr.mxu0 0.0
  %178 = vmatpush1.xpose.msra.mxu0 0.0
  %179 = vmatprep.subr.mxu0 0.0
  %180 = vmatpush1.xpose.msra.mxu0 0.0
  %181 = vmatprep.subr.mxu0 0.0
  %182 = vmatpush1.xpose.msra.mxu0 0.0
  %183 = vmatprep.mubr.f32.mxu0 0.0
  %184 = vmatmul.mubr.f32.gmra.mrb[0].mxu0 %v60
  %v185 = vpop.f32.mrb[0].mxu0
  %v186 = vadd.f32 %v41, %v185
  %v187 = vpop.f32.mrb[0].mxu0
  %188 = vmatprep.mubr.f32.mxu0 0.0
  %189 = vmatmul.mubr.f32.gmra.mrb[0].mxu0 %v63
  %v190 = vpop.f32.mrb[0].mxu0
  %v191 = vadd.f32 %v46, %v190
  %v192 = vpop.f32.mrb[0].mxu0
  %193 = vmatprep.mubr.f32.mxu0 0.0
  %194 = vmatmul.mubr.f32.gmra.mrb[0].mxu0 %v66
  %v195 = vpop.f32.mrb[0].mxu0
  %v196 = vadd.f32 %v51, %v195
  %v197 = vpop.f32.mrb[0].mxu0
  %198 = vmatprep.mubr.f32.mxu0 0.0
  %199 = vmatmul.mubr.f32.gmra.mrb[0].mxu0 %v69
  %v200 = vpop.f32.mrb[0].mxu0
  %v201 = vadd.f32 %v56, %v200
  %v202 = vpop.f32.mrb[0].mxu0
  %203 = vdwg.mxu0
  %v204 = vmax.f32 %v186, 0.0
  %v205 = vmax.f32 %v191, 0.0
  %v206 = vmax.f32 %v196, 0.0
  %v207 = vmax.f32 %v201, 0.0
  %s208 = scalar_lea.vmem %s1, 128
  %v209 = vld [vmem:[%s208] sm:$0xff]
  %v210 = vld [vmem:[%s208 + $0x8] sm:$0xff]
  %v211 = vld [vmem:[%s208 + $0x10] sm:$0xff]
  %v212 = vld [vmem:[%s208 + $0x18] sm:$0xff]
  %v213 = vld [vmem:[%s208 + $0x20] sm:$0xff]
  %v214 = vld [vmem:[%s208 + $0x28] sm:$0xff]
  %v215 = vld [vmem:[%s208 + $0x30] sm:$0xff]
  %v216 = vld [vmem:[%s208 + $0x38] sm:$0xff]
  %s217 = scalar_lea.vmem %s2, 128
  %v218 = vld [vmem:[%s217] sm:$0xff]
  %v219 = vld [vmem:[%s217 + $0x8] sm:$0xff]
  %v220 = vld [vmem:[%s217 + $0x10] sm:$0xff]
  %v221 = vld [vmem:[%s217 + $0x18] sm:$0xff]
  %v222 = vld [vmem:[%s217 + $0x20] sm:$0xff]
  %v223 = vld [vmem:[%s217 + $0x28] sm:$0xff]
  %v224 = vld [vmem:[%s217 + $0x30] sm:$0xff]
  %v225 = vld [vmem:[%s217 + $0x38] sm:$0xff]
  %227 = vset.pattern.permute.xlu0 0
  %228 = vperm.xlu0 %227, %v218
  %v229 = vpop.permute.xlu0 %228
  %232 = vset.pattern.permute.xlu0 0
  %233 = vperm.xlu0 %232, %v219
  %v234 = vpop.permute.xlu0 %233
  %237 = vset.pattern.permute.xlu0 0
  %238 = vperm.xlu0 %237, %v220
  %v239 = vpop.permute.xlu0 %238
  %242 = vset.pattern.permute.xlu0 0
  %243 = vperm.xlu0 %242, %v221
  %v244 = vpop.permute.xlu0 %243
  %247 = vset.pattern.permute.xlu0 0
  %248 = vperm.xlu0 %247, %v222
  %v249 = vpop.permute.xlu0 %248
  %252 = vset.pattern.permute.xlu0 0
  %253 = vperm.xlu0 %252, %v223
  %v254 = vpop.permute.xlu0 %253
  %257 = vset.pattern.permute.xlu0 0
  %258 = vperm.xlu0 %257, %v224
  %v259 = vpop.permute.xlu0 %258
  %262 = vset.pattern.permute.xlu0 0
  %263 = vperm.xlu0 %262, %v225
  %v264 = vpop.permute.xlu0 %263
  %vm266 = vcmask 261120
  %v268 = vsel %vm266, %v209, 0
  %v271 = vsel %vm266, %v210, 0
  %v274 = vsel %vm266, %v211, 0
  %v277 = vsel %vm266, %v212, 0
  %v280 = vsel %vm266, %v213, 0
  %v283 = vsel %vm266, %v214, 0
  %v286 = vsel %vm266, %v215, 0
  %v289 = vsel %vm266, %v216, 0
  %291 = vmatprep.subr.mxu0 0.0
  %292 = vmatpush1.msra.mxu0 %v204
  %293 = vmatprep.subr.mxu0 0.0
  %294 = vmatpush1.msra.mxu0 %v205
  %295 = vmatprep.subr.mxu0 0.0
  %296 = vmatpush1.msra.mxu0 %v206
  %297 = vmatprep.subr.mxu0 0.0
  %298 = vmatpush1.msra.mxu0 %v207
  %299 = vmatprep.subr.mxu0 0.0
  %300 = vmatpush1.msra.mxu0 0.0
  %301 = vmatprep.subr.mxu0 0.0
  %302 = vmatpush1.msra.mxu0 0.0
  %303 = vmatprep.subr.mxu0 0.0
  %304 = vmatpush1.msra.mxu0 0.0
  %305 = vmatprep.subr.mxu0 0.0
  %306 = vmatpush1.msra.mxu0 0.0
  %307 = vmatprep.subr.mxu0 0.0
  %308 = vmatpush1.msra.mxu0 0.0
  %309 = vmatprep.subr.mxu0 0.0
  %310 = vmatpush1.msra.mxu0 0.0
  %311 = vmatprep.subr.mxu0 0.0
  %312 = vmatpush1.msra.mxu0 0.0
  %313 = vmatprep.subr.mxu0 0.0
  %314 = vmatpush1.msra.mxu0 0.0
  %315 = vmatprep.subr.mxu0 0.0
  %316 = vmatpush1.msra.mxu0 0.0
  %317 = vmatprep.subr.mxu0 0.0
  %318 = vmatpush1.msra.mxu0 0.0
  %319 = vmatprep.subr.mxu0 0.0
  %320 = vmatpush1.msra.mxu0 0.0
  %321 = vmatprep.subr.mxu0 0.0
  %322 = vmatpush1.msra.mxu0 0.0
  %323 = vmatprep.subr.mxu0 0.0
  %324 = vmatpush1.msra.mxu0 0.0
  %325 = vmatprep.subr.mxu0 0.0
  %326 = vmatpush1.msra.mxu0 0.0
  %327 = vmatprep.subr.mxu0 0.0
  %328 = vmatpush1.msra.mxu0 0.0
  %329 = vmatprep.subr.mxu0 0.0
  %330 = vmatpush1.msra.mxu0 0.0
  %331 = vmatprep.subr.mxu0 0.0
  %332 = vmatpush1.msra.mxu0 0.0
  %333 = vmatprep.subr.mxu0 0.0
  %334 = vmatpush1.msra.mxu0 0.0
  %335 = vmatprep.subr.mxu0 0.0
  %336 = vmatpush1.msra.mxu0 0.0
  %337 = vmatprep.subr.mxu0 0.0
  %338 = vmatpush1.msra.mxu0 0.0
  %339 = vmatprep.subr.mxu0 0.0
  %340 = vmatpush1.msra.mxu0 0.0
  %341 = vmatprep.subr.mxu0 0.0
  %342 = vmatpush1.msra.mxu0 0.0
  %343 = vmatprep.subr.mxu0 0.0
  %344 = vmatpush1.msra.mxu0 0.0
  %345 = vmatprep.subr.mxu0 0.0
  %346 = vmatpush1.msra.mxu0 0.0
  %347 = vmatprep.subr.mxu0 0.0
  %348 = vmatpush1.msra.mxu0 0.0
  %349 = vmatprep.subr.mxu0 0.0
  %350 = vmatpush1.msra.mxu0 0.0
  %351 = vmatprep.subr.mxu0 0.0
  %352 = vmatpush1.msra.mxu0 0.0
  %353 = vmatprep.subr.mxu0 0.0
  %354 = vmatpush1.msra.mxu0 0.0
  %355 = vmatprep.mubr.f32.mxu0 0.0
  %356 = vmatmul.mubr.f32.gmra.mrb[0].mxu0 %v268
  %v357 = vpop.f32.mrb[0].mxu0
  %v358 = vadd.f32 %v229, %v357
  %v359 = vpop.f32.mrb[0].mxu0
  %360 = vmatprep.mubr.f32.mxu0 0.0
  %361 = vmatmul.mubr.f32.gmra.mrb[0].mxu0 %v271
  %v362 = vpop.f32.mrb[0].mxu0
  %v363 = vadd.f32 %v234, %v362
  %v364 = vpop.f32.mrb[0].mxu0
  %365 = vmatprep.mubr.f32.mxu0 0.0
  %366 = vmatmul.mubr.f32.gmra.mrb[0].mxu0 %v274
  %v367 = vpop.f32.mrb[0].mxu0
  %v368 = vadd.f32 %v239, %v367
  %v369 = vpop.f32.mrb[0].mxu0
  %370 = vmatprep.mubr.f32.mxu0 0.0
  %371 = vmatmul.mubr.f32.gmra.mrb[0].mxu0 %v277
  %v372 = vpop.f32.mrb[0].mxu0
  %v373 = vadd.f32 %v244, %v372
  %v374 = vpop.f32.mrb[0].mxu0
  %375 = vmatprep.mubr.f32.mxu0 0.0
  %376 = vmatmul.mubr.f32.gmra.mrb[0].mxu0 %v280
  %v377 = vpop.f32.mrb[0].mxu0
  %v378 = vadd.f32 %v249, %v377
  %v379 = vpop.f32.mrb[0].mxu0
  %380 = vmatprep.mubr.f32.mxu0 0.0
  %381 = vmatmul.mubr.f32.gmra.mrb[0].mxu0 %v283
  %v382 = vpop.f32.mrb[0].mxu0
  %v383 = vadd.f32 %v254, %v382
  %v384 = vpop.f32.mrb[0].mxu0
  %385 = vmatprep.mubr.f32.mxu0 0.0
  %386 = vmatmul.mubr.f32.gmra.mrb[0].mxu0 %v286
  %v387 = vpop.f32.mrb[0].mxu0
  %v388 = vadd.f32 %v259, %v387
  %v389 = vpop.f32.mrb[0].mxu0
  %390 = vmatprep.mubr.f32.mxu0 0.0
  %391 = vmatmul.mubr.f32.gmra.mrb[0].mxu0 %v289
  %v392 = vpop.f32.mrb[0].mxu0
  %v393 = vadd.f32 %v264, %v392
  %v394 = vpop.f32.mrb[0].mxu0
  %395 = vdwg.mxu0
  %v396 = vmax.f32 %v358, 0.0
  %v397 = vmax.f32 %v363, 0.0
  %v398 = vmax.f32 %v368, 0.0
  %v399 = vmax.f32 %v373, 0.0
  %v400 = vmax.f32 %v378, 0.0
  %v401 = vmax.f32 %v383, 0.0
  %v402 = vmax.f32 %v388, 0.0
  %v403 = vmax.f32 %v393, 0.0
  %s404 = scalar_lea.vmem %s1, 256
  %v405 = vld [vmem:[%s404] sm:$0xff]
  %v406 = vld [vmem:[%s404 + $0x8] sm:$0xff]
  %v407 = vld [vmem:[%s404 + $0x10] sm:$0xff]
  %v408 = vld [vmem:[%s404 + $0x18] sm:$0xff]
  %s409 = scalar_lea.vmem %s2, 256
  %v410 = vld [vmem:[%s409] sm:$0xff]
  %v411 = vld [vmem:[%s409 + $0x8] sm:$0xff]
  %v412 = vld [vmem:[%s409 + $0x10] sm:$0xff]
  %v413 = vld [vmem:[%s409 + $0x18] sm:$0xff]
  %415 = vset.pattern.permute.xlu0 0
  %416 = vperm.xlu0 %415, %v410
  %v417 = vpop.permute.xlu0 %416
  %420 = vset.pattern.permute.xlu0 0
  %421 = vperm.xlu0 %420, %v411
  %v422 = vpop.permute.xlu0 %421
  %425 = vset.pattern.permute.xlu0 0
  %426 = vperm.xlu0 %425, %v412
  %v427 = vpop.permute.xlu0 %426
  %430 = vset.pattern.permute.xlu0 0
  %431 = vperm.xlu0 %430, %v413
  %v432 = vpop.permute.xlu0 %431
  %vm434 = vcmask 523264
  %v436 = vsel %vm434, %v405, 0
  %v439 = vsel %vm434, %v406, 0
  %v442 = vsel %vm434, %v407, 0
  %v445 = vsel %vm434, %v408, 0
  %447 = vmatprep.subr.mxu0 0.0
  %448 = vmatpush1.msra.mxu0 %v396
  %449 = vmatprep.subr.mxu0 0.0
  %450 = vmatpush1.msra.mxu0 %v397
  %451 = vmatprep.subr.mxu0 0.0
  %452 = vmatpush1.msra.mxu0 %v398
  %453 = vmatprep.subr.mxu0 0.0
  %454 = vmatpush1.msra.mxu0 %v399
  %455 = vmatprep.subr.mxu0 0.0
  %456 = vmatpush1.msra.mxu0 %v400
  %457 = vmatprep.subr.mxu0 0.0
  %458 = vmatpush1.msra.mxu0 %v401
  %459 = vmatprep.subr.mxu0 0.0
  %460 = vmatpush1.msra.mxu0 %v402
  %461 = vmatprep.subr.mxu0 0.0
  %462 = vmatpush1.msra.mxu0 %v403
  %463 = vmatprep.subr.mxu0 0.0
  %464 = vmatpush1.msra.mxu0 0.0
  %465 = vmatprep.subr.mxu0 0.0
  %466 = vmatpush1.msra.mxu0 0.0
  %467 = vmatprep.subr.mxu0 0.0
  %468 = vmatpush1.msra.mxu0 0.0
  %469 = vmatprep.subr.mxu0 0.0
  %470 = vmatpush1.msra.mxu0 0.0
  %471 = vmatprep.subr.mxu0 0.0
  %472 = vmatpush1.msra.mxu0 0.0
  %473 = vmatprep.subr.mxu0 0.0
  %474 = vmatpush1.msra.mxu0 0.0
  %475 = vmatprep.subr.mxu0 0.0
  %476 = vmatpush1.msra.mxu0 0.0
  %477 = vmatprep.subr.mxu0 0.0
  %478 = vmatpush1.msra.mxu0 0.0
  %479 = vmatprep.subr.mxu0 0.0
  %480 = vmatpush1.msra.mxu0 0.0
  %481 = vmatprep.subr.mxu0 0.0
  %482 = vmatpush1.msra.mxu0 0.0
  %483 = vmatprep.subr.mxu0 0.0
  %484 = vmatpush1.msra.mxu0 0.0
  %485 = vmatprep.subr.mxu0 0.0
  %486 = vmatpush1.msra.mxu0 0.0
  %487 = vmatprep.subr.mxu0 0.0
  %488 = vmatpush1.msra.mxu0 0.0
  %489 = vmatprep.subr.mxu0 0.0
  %490 = vmatpush1.msra.mxu0 0.0
  %491 = vmatprep.subr.mxu0 0.0
  %492 = vmatpush1.msra.mxu0 0.0
  %493 = vmatprep.subr.mxu0 0.0
  %494 = vmatpush1.msra.mxu0 0.0
  %495 = vmatprep.subr.mxu0 0.0
  %496 = vmatpush1.msra.mxu0 0.0
  %497 = vmatprep.subr.mxu0 0.0
  %498 = vmatpush1.msra.mxu0 0.0
  %499 = vmatprep.subr.mxu0 0.0
  %500 = vmatpush1.msra.mxu0 0.0
  %501 = vmatprep.subr.mxu0 0.0
  %502 = vmatpush1.msra.mxu0 0.0
  %503 = vmatprep.subr.mxu0 0.0
  %504 = vmatpush1.msra.mxu0 0.0
  %505 = vmatprep.subr.mxu0 0.0
  %506 = vmatpush1.msra.mxu0 0.0
  %507 = vmatprep.subr.mxu0 0.0
  %508 = vmatpush1.msra.mxu0 0.0
  %509 = vmatprep.subr.mxu0 0.0
  %510 = vmatpush1.msra.mxu0 0.0
  %511 = vmatprep.mubr.f32.mxu0 0.0
  %512 = vmatmul.mubr.f32.gmra.mrb[0].mxu0 %v436
  %v513 = vpop.f32.mrb[0].mxu0
  %v514 = vadd.f32 %v417, %v513
  %v515 = vpop.f32.mrb[0].mxu0
  %516 = vmatprep.mubr.f32.mxu0 0.0
  %517 = vmatmul.mubr.f32.gmra.mrb[0].mxu0 %v439
  %v518 = vpop.f32.mrb[0].mxu0
  %v519 = vadd.f32 %v422, %v518
  %v520 = vpop.f32.mrb[0].mxu0
  %521 = vmatprep.mubr.f32.mxu0 0.0
  %522 = vmatmul.mubr.f32.gmra.mrb[0].mxu0 %v442
  %v523 = vpop.f32.mrb[0].mxu0
  %v524 = vadd.f32 %v427, %v523
  %v525 = vpop.f32.mrb[0].mxu0
  %526 = vmatprep.mubr.f32.mxu0 0.0
  %527 = vmatmul.mubr.f32.gmra.mrb[0].mxu0 %v445
  %v528 = vpop.f32.mrb[0].mxu0
  %v529 = vadd.f32 %v432, %v528
  %v530 = vpop.f32.mrb[0].mxu0
  %531 = vdwg.mxu0
  %v532 = vmax.f32 %v514, 0.0
  %v533 = vmax.f32 %v519, 0.0
  %v534 = vmax.f32 %v524, 0.0
  %v535 = vmax.f32 %v529, 0.0
  %s536 = scalar_lea.vmem %s1, 384
  %v537 = vld [vmem:[%s536] sm:$0xff]
  %s538 = scalar_lea.vmem %s2, 384
  %v539 = vld [vmem:[%s538] sm:$0xff]
  %541 = vset.pattern.permute.xlu0 0
  %542 = vperm.xlu0 %541, %v539
  %v543 = vpop.permute.xlu0 %542
  %v546 = vsel %vm266, %v537, 0
  %548 = vmatprep.subr.mxu0 0.0
  %549 = vmatpush1.msra.mxu0 %v532
  %550 = vmatprep.subr.mxu0 0.0
  %551 = vmatpush1.msra.mxu0 %v533
  %552 = vmatprep.subr.mxu0 0.0
  %553 = vmatpush1.msra.mxu0 %v534
  %554 = vmatprep.subr.mxu0 0.0
  %555 = vmatpush1.msra.mxu0 %v535
  %556 = vmatprep.subr.mxu0 0.0
  %557 = vmatpush1.msra.mxu0 0.0
  %558 = vmatprep.subr.mxu0 0.0
  %559 = vmatpush1.msra.mxu0 0.0
  %560 = vmatprep.subr.mxu0 0.0
  %561 = vmatpush1.msra.mxu0 0.0
  %562 = vmatprep.subr.mxu0 0.0
  %563 = vmatpush1.msra.mxu0 0.0
  %564 = vmatprep.subr.mxu0 0.0
  %565 = vmatpush1.msra.mxu0 0.0
  %566 = vmatprep.subr.mxu0 0.0
  %567 = vmatpush1.msra.mxu0 0.0
  %568 = vmatprep.subr.mxu0 0.0
  %569 = vmatpush1.msra.mxu0 0.0
  %570 = vmatprep.subr.mxu0 0.0
  %571 = vmatpush1.msra.mxu0 0.0
  %572 = vmatprep.subr.mxu0 0.0
  %573 = vmatpush1.msra.mxu0 0.0
  %574 = vmatprep.subr.mxu0 0.0
  %575 = vmatpush1.msra.mxu0 0.0
  %576 = vmatprep.subr.mxu0 0.0
  %577 = vmatpush1.msra.mxu0 0.0
  %578 = vmatprep.subr.mxu0 0.0
  %579 = vmatpush1.msra.mxu0 0.0
  %580 = vmatprep.subr.mxu0 0.0
  %581 = vmatpush1.msra.mxu0 0.0
  %582 = vmatprep.subr.mxu0 0.0
  %583 = vmatpush1.msra.mxu0 0.0
  %584 = vmatprep.subr.mxu0 0.0
  %585 = vmatpush1.msra.mxu0 0.0
  %586 = vmatprep.subr.mxu0 0.0
  %587 = vmatpush1.msra.mxu0 0.0
  %588 = vmatprep.subr.mxu0 0.0
  %589 = vmatpush1.msra.mxu0 0.0
  %590 = vmatprep.subr.mxu0 0.0
  %591 = vmatpush1.msra.mxu0 0.0
  %592 = vmatprep.subr.mxu0 0.0
  %593 = vmatpush1.msra.mxu0 0.0
  %594 = vmatprep.subr.mxu0 0.0
  %595 = vmatpush1.msra.mxu0 0.0
  %596 = vmatprep.subr.mxu0 0.0
  %597 = vmatpush1.msra.mxu0 0.0
  %598 = vmatprep.subr.mxu0 0.0
  %599 = vmatpush1.msra.mxu0 0.0
  %600 = vmatprep.subr.mxu0 0.0
  %601 = vmatpush1.msra.mxu0 0.0
  %602 = vmatprep.subr.mxu0 0.0
  %603 = vmatpush1.msra.mxu0 0.0
  %604 = vmatprep.subr.mxu0 0.0
  %605 = vmatpush1.msra.mxu0 0.0
  %606 = vmatprep.subr.mxu0 0.0
  %607 = vmatpush1.msra.mxu0 0.0
  %608 = vmatprep.subr.mxu0 0.0
  %609 = vmatpush1.msra.mxu0 0.0
  %610 = vmatprep.subr.mxu0 0.0
  %611 = vmatpush1.msra.mxu0 0.0
  %612 = vmatprep.mubr.f32.mxu0 0.0
  %613 = vmatmul.mubr.f32.gmra.mrb[0].mxu0 %v546
  %v614 = vpop.f32.mrb[0].mxu0
  %v615 = vadd.f32 %v543, %v614
  %v616 = vpop.f32.mrb[0].mxu0
  %617 = vdwg.mxu0
  %618 = vxpose.xlu0.b32.start [1/16] %v615, 128
  %619 = vxpose.xlu0.b32.cont [2/16] 0.0, 128
  %620 = vxpose.xlu0.b32.cont [3/16] 0.0, 128
  %621 = vxpose.xlu0.b32.cont [4/16] 0.0, 128
  %622 = vxpose.xlu0.b32.cont [5/16] 0.0, 128
  %623 = vxpose.xlu0.b32.cont [6/16] 0.0, 128
  %624 = vxpose.xlu0.b32.cont [7/16] 0.0, 128
  %625 = vxpose.xlu0.b32.cont [8/16] 0.0, 128
  %626 = vxpose.xlu0.b32.cont [9/16] 0.0, 128
  %627 = vxpose.xlu0.b32.cont [10/16] 0.0, 128
  %628 = vxpose.xlu0.b32.cont [11/16] 0.0, 128
  %629 = vxpose.xlu0.b32.cont [12/16] 0.0, 128
  %630 = vxpose.xlu0.b32.cont [13/16] 0.0, 128
  %631 = vxpose.xlu0.b32.cont [14/16] 0.0, 128
  %632 = vxpose.xlu0.b32.cont [15/16] 0.0, 128
  %633 = vxpose.xlu0.b32.end [16/16] 0.0, 128
  %v634 = vpop.trf.xlu0
  %v635 = vpop.trf.xlu0
  %v636 = vpop.trf.xlu0
  %v637 = vpop.trf.xlu0
  %v638 = vpop.trf.xlu0
  %v639 = vpop.trf.xlu0
  %v640 = vpop.trf.xlu0
  %v641 = vpop.trf.xlu0
  %v642 = vpop.trf.xlu0
  %v643 = vpop.trf.xlu0
  %v644 = vpop.trf.xlu0
  %v645 = vpop.trf.xlu0
  %v646 = vpop.trf.xlu0
  %v647 = vpop.trf.xlu0
  %v648 = vpop.trf.xlu0
  %v649 = vpop.trf.xlu0
  %vm650 = vcmask 31744
  %651 = vst.msk [vmem:[%s3] sm:$0xff] %vm650, %v634
  %652 = vst.msk [vmem:[%s3 + $0x8] sm:$0xff] %vm650, %v635
  %653 = vst.msk [vmem:[%s3 + $0x10] sm:$0xff] %vm650, %v636
  %654 = vst.msk [vmem:[%s3 + $0x18] sm:$0xff] %vm650, %v637
  %655 = vst.msk [vmem:[%s3 + $0x20] sm:$0xff] %vm650, %v638
  %656 = vst.msk [vmem:[%s3 + $0x28] sm:$0xff] %vm650, %v639
  %657 = vst.msk [vmem:[%s3 + $0x30] sm:$0xff] %vm650, %v640
  %658 = vst.msk [vmem:[%s3 + $0x38] sm:$0xff] %vm650, %v641
  %659 = vst.msk [vmem:[%s3 + $0x40] sm:$0xff] %vm650, %v642
  %660 = vst.msk [vmem:[%s3 + $0x48] sm:$0xff] %vm650, %v643
  %661 = vst.msk [vmem:[%s3 + $0x50] sm:$0xff] %vm650, %v644
  %662 = vst.msk [vmem:[%s3 + $0x58] sm:$0xff] %vm650, %v645
  %663 = vst.msk [vmem:[%s3 + $0x60] sm:$0xff] %vm650, %v646
  %664 = vst.msk [vmem:[%s3 + $0x68] sm:$0xff] %vm650, %v647
  %665 = vst.msk [vmem:[%s3 + $0x70] sm:$0xff] %vm650, %v648
  %666 = vst.msk [vmem:[%s3 + $0x78] sm:$0xff] %vm650, %v649
  // Predicated region
  $region14: #{tpu_custom_call.1} parent=0 // pred_check
    _
  $region15: #{tpu_custom_call.1} parent=0 // pred_check_branch
    %668 = sbr.rel (0) target = $region17
  $region16: #{tpu_custom_call.1} parent=0 // pred_region
    _
  $region17: #{tpu_custom_call.1} parent=0 // pred_fallthru
    _
  // Predicated region
  $region18: #{tpu_custom_call.1} parent=0 // pred_check
    _
  $region19: #{tpu_custom_call.1} parent=0 // pred_check_branch
    %670 = sbr.rel (0) target = $region21
  $region20: #{tpu_custom_call.1} parent=0 // pred_region
    _
  $region21: #{tpu_custom_call.1} parent=0 // pred_fallthru
    _

</llo_original>
